<compile_context>
chip_gen: v7x
topology: tpu7x:2x2x1
jax: 0.10.0
libtpu: 0.0.40
codegen_flags: <defaults>
</compile_context>

<pallas_src>
import functools

import jax
import jax.numpy as jnp
from jax import lax
from jax.experimental import pallas as pl
from jax.experimental.pallas import tpu as pltpu


# --------------------------------------------------------------------------- #
# Small helpers
# --------------------------------------------------------------------------- #
def _round_up(x: int, m: int) -> int:
    return ((x + m - 1) // m) * m


def _cdiv(a: int, b: int) -> int:
    return (a + b - 1) // b


def _vmem_capacity_bytes() -> int:
    """Physical VMEM per core; conservative 64 MiB (v7x) fallback."""
    try:
        info = pltpu.get_tpu_info()
        for name in ("vmem_capacity_bytes", "vmem_size_bytes", "vmem_bytes"):
            cap = getattr(info, name, None)
            if cap:
                return int(cap)
    except Exception:
        pass
    return 64 << 20


# --------------------------------------------------------------------------- #
# Kernels
# --------------------------------------------------------------------------- #
def _evi_single_block_kernel(a_ref, h_ref, o_ref, *, compute_dtype):
    # Whole problem resident in VMEM: one MXU dot, cast in VMEM (no HBM copies).
    a = a_ref[...].astype(compute_dtype)
    h = h_ref[...].astype(compute_dtype)
    o_ref[...] = jnp.dot(a, h, preferred_element_type=jnp.float32).astype(o_ref.dtype)


def _evi_tiled_kernel(a_ref, h_ref, o_ref, acc_ref, *, tk, n_src, compute_dtype,
                      h_resident, mask_k_tail):
    # Grid = (nm, nk); K (source nodes, reduction) is the last axis.
    # adj arrives untouched from HBM; ragged K tail columns are zeroed here so the
    # (zero-padded) h tail contributes exactly 0 to the accumulation.
    k = pl.program_id(1)

    @pl.when(k == 0)
    def _():
        acc_ref[...] = jnp.zeros_like(acc_ref)

    a = a_ref[...]
    if mask_k_tail:
        col = k * tk + lax.broadcasted_iota(jnp.int32, a.shape, 1)
        a = jnp.where(col < n_src, a, jnp.zeros_like(a))
    a = a.astype(compute_dtype)

    if h_resident:
        # h_ref is the full (k_pad, D) feature matrix pinned in VMEM (read from HBM
        # exactly once); slice the current K tile in VMEM.
        start = pl.multiple_of(k * tk, tk)
        h_blk = h_ref[pl.ds(start, tk), :]
    else:
        # h streamed as (tk, D) blocks keyed on k.
        h_blk = h_ref[...]
    h_blk = h_blk.astype(compute_dtype)

    acc_ref[...] += jnp.dot(a, h_blk, preferred_element_type=jnp.float32)

    @pl.when(k == pl.num_programs(1) - 1)
    def _():
        o_ref[...] = acc_ref[...].astype(o_ref.dtype)


# --------------------------------------------------------------------------- #
# Wrapper
# --------------------------------------------------------------------------- #
def evi_passing_layer(
    adj,
    h,
    *,
    use_bf16: bool = False,          # opt-in: bf16 MXU compute (rounds h)
    tm_max: int = 512,
    tk_max: int = 1024,
    fast_path_max_bytes=None,        # None -> derived from VMEM capacity
    h_resident_max_bytes=None,       # None -> derived from VMEM capacity
):
    """o[v] = sum over in-edges (u->v) of h[u]  ==  adj @ h.

    adj: [N_dst, N_src]; adj[v, u] = 1 if edge u->v (f32 / bf16 / int8 / bool all OK;
         int8/bool quarters the dominant HBM stream vs f32 with no numerical change).
    h:   [N_src, D] node features.
    """
    n_dst, n_src = adj.shape
    n_h, d = h.shape
    assert n_src == n_h, "adjacency / feature shape mismatch"

    out_dtype = h.dtype
    adj_b = jnp.dtype(adj.dtype).itemsize
    h_b = jnp.dtype(h.dtype).itemsize
    out_b = jnp.dtype(out_dtype).itemsize

    if use_bf16 or h.dtype == jnp.bfloat16:
        compute_dtype = jnp.bfloat16
    else:
        compute_dtype = jnp.float32

    vmem_cap = _vmem_capacity_bytes()
    vmem_budget = vmem_cap * 3 // 4
    if fast_path_max_bytes is None:
        fast_path_max_bytes = vmem_cap // 16 if vmem_cap >= (96 << 20) else vmem_cap // 32
    if h_resident_max_bytes is None:
        h_resident_max_bytes = vmem_cap // 4

    flops = 2 * n_dst * n_src * d

    # ---------------- Fast path: whole problem as a single VMEM block ---------- #
    fast_bytes = n_dst * n_src * adj_b + n_src * d * h_b + n_dst * d * out_b
    if fast_bytes <= fast_path_max_bytes:
        return pl.pallas_call(
            functools.partial(_evi_single_block_kernel, compute_dtype=compute_dtype),
            out_shape=jax.ShapeDtypeStruct((n_dst, d), out_dtype),
            in_specs=[
                pl.BlockSpec(memory_space=pltpu.MemorySpace.VMEM),
                pl.BlockSpec(memory_space=pltpu.MemorySpace.VMEM),
            ],
            out_specs=pl.BlockSpec(memory_space=pltpu.MemorySpace.VMEM),
            cost_estimate=pl.CostEstimate(
                flops=flops, transcendentals=0, bytes_accessed=fast_bytes),
            compiler_params=pltpu.CompilerParams(
                vmem_limit_bytes=int(min(vmem_budget, max(32 << 20, 4 * fast_bytes)))),
        )(adj, h)

    # ---------------- Tiled path ------------------------------------------------ #
    # Tile selection with bounded padding: per-tile padding <= one sublane / lane
    # group.  Sublane granularity follows the adj element size (32 for 1-byte adj).
    gran_m = 32 if adj_b == 1 else 16
    m_units = _round_up(n_dst, gran_m)
    nm = _cdiv(m_units, tm_max)
    if m_units >= 2 * gran_m:
        nm = max(nm, 2)          # >= 2 parallel M tiles so v7x megacore can split.
    tm = _round_up(_cdiv(m_units, nm), gran_m)

    k_units = _round_up(n_src, 128)
    nk = _cdiv(k_units, tk_max)
    tk = _round_up(_cdiv(k_units, nk), 128)

    # Safety shrink for very wide D / huge tiles so VMEM never overflows.
    while tm > gran_m and (tm * d * 4 + 2 * tm * d * out_b + 2 * tm * tk * adj_b) > vmem_budget // 2:
        tm = _round_up(tm // 2, gran_m)
    while tk > 128 and (2 * tm * tk * adj_b + 2 * tk * d * h_b) > vmem_budget // 2:
        tk = _round_up(tk // 2, 128)

    nm = _cdiv(n_dst, tm)
    nk = _cdiv(n_src, tk)
    k_pad = nk * tk
    mask_k_tail = k_pad > n_src

    # h is the minor stream: zero-pad only its K tail (cheap) so both the resident
    # slab and the streamed K blocks are well defined; adj stays untouched in HBM.
    h_p = jnp.pad(h, ((0, k_pad - n_src), (0, 0))) if k_pad > n_src else h

    footprint_resident = (2 * tm * tk * adj_b + 2 * k_pad * d * h_b
                          + 2 * tm * d * out_b + tm * d * 4)
    h_resident = (2 * k_pad * d * h_b <= h_resident_max_bytes
                  and footprint_resident <= vmem_budget)

    if h_resident:
        h_spec = pl.BlockSpec((k_pad, d), lambda i, k: (0, 0))   # fetched once
        h_vmem_bytes = 2 * k_pad * d * h_b
        h_hbm_bytes = k_pad * d * h_b
    else:
        h_spec = pl.BlockSpec((tk, d), lambda i, k: (k, 0))      # re-read per M tile
        h_vmem_bytes = 2 * tk * d * h_b
        h_hbm_bytes = nm * k_pad * d * h_b

    footprint = 2 * tm * tk * adj_b + h_vmem_bytes + 2 * tm * d * out_b + tm * d * 4
    bytes_accessed = n_dst * n_src * adj_b + h_hbm_bytes + n_dst * d * out_b

    kernel = functools.partial(
        _evi_tiled_kernel, tk=tk, n_src=n_src, compute_dtype=compute_dtype,
        h_resident=h_resident, mask_k_tail=mask_k_tail)

    return pl.pallas_call(
        kernel,
        out_shape=jax.ShapeDtypeStruct((n_dst, d), out_dtype),
        grid_spec=pltpu.PrefetchScalarGridSpec(
            num_scalar_prefetch=0,
            grid=(nm, nk),
            in_specs=[
                pl.BlockSpec((tm, tk), lambda i, k: (i, k)),     # adj, read once
                h_spec,
            ],
            out_specs=pl.BlockSpec((tm, d), lambda i, k: (i, 0)),
            scratch_shapes=[pltpu.VMEM((tm, d), jnp.float32)],
        ),
        compiler_params=pltpu.CompilerParams(
            dimension_semantics=("parallel", "arbitrary"),
            vmem_limit_bytes=int(min(vmem_budget, max(32 << 20, 2 * footprint))),
        ),
        cost_estimate=pl.CostEstimate(
            flops=flops, transcendentals=0, bytes_accessed=bytes_accessed),
    )(adj, h_p)


# --------------------------------------------------------------------------- #
# Reference + self-test
# --------------------------------------------------------------------------- #
def _reference(adj, h):
    # Pure-JAX reference of DGL copy_u + sum (== adj @ h) in f32.
    return jnp.dot(adj.astype(jnp.float32), h.astype(jnp.float32),
                   preferred_element_type=jnp.float32).astype(h.dtype)


if __name__ == "__main__":
    key = jax.random.PRNGKey(0)
    k1, k2, k3, k4 = jax.random.split(key, 4)

    # --- Test 1: small graph (96 nodes, 48 feats) -> single-block fast path ----
    n1, d1 = 96, 48
    adj1 = (jax.random.uniform(k1, (n1, n1)) < 0.1).astype(jnp.float32)
    h1 = jax.random.normal(k2, (n1, d1), dtype=jnp.float32)
    o1 = jax.block_until_ready(evi_passing_layer(adj1, h1))
    assert o1.shape == (n1, d1)
    assert bool(jnp.isfinite(o1).all())
    assert jnp.allclose(o1, _reference(adj1, h1), atol=5e-2, rtol=5e-2)

    # --- Test 2: ragged graph -> tiled path, resident h, masked K tail ---------
    n2, d2 = 200, 48
    adj2 = (jax.random.uniform(k3, (n2, n2)) < 0.15).astype(jnp.float32)
    h2 = jax.random.normal(k4, (n2, d2), dtype=jnp.float32)
    o2 = jax.block_until_ready(evi_passing_layer(adj2, h2, fast_path_max_bytes=0))
    assert o2.shape == (n2, d2)
    assert bool(jnp.isfinite(o2).all())
    assert jnp.allclose(o2, _reference(adj2, h2), atol=5e-2, rtol=5e-2)

    # --- Test 3: streamed (non-resident) h, multi-step K accumulation ----------
    o3 = jax.block_until_ready(
        evi_passing_layer(adj2, h2, fast_path_max_bytes=0,
                          h_resident_max_bytes=0, tm_max=128, tk_max=128))
    assert o3.shape == (n2, d2)
    assert bool(jnp.isfinite(o3).all())
    assert jnp.allclose(o3, _reference(adj2, h2), atol=5e-2, rtol=5e-2)

    # --- Test 4: int8 adjacency in HBM (4x less adj traffic), bf16 MXU compute -
    adj2_i8 = adj2.astype(jnp.int8)
    o4 = jax.block_until_ready(
        evi_passing_layer(adj2_i8, h2, use_bf16=True, fast_path_max_bytes=0))
    assert o4.shape == (n2, d2)
    assert bool(jnp.isfinite(o4).all())
    assert jnp.allclose(o4, _reference(adj2, h2), atol=0.5, rtol=0.1)

    print("KERNEL_OK")
</pallas_src>

<mosaic_0001>
module attributes {stable_mosaic.version = 11 : i64} {
  func.func @_evi_single_block_kernel(%arg0: memref<96x96xf32, #tpu.memory_space<vmem>>, %arg1: memref<96x48xf32, #tpu.memory_space<vmem>>, %arg2: memref<96x48xf32, #tpu.memory_space<vmem>>) attributes {dimension_semantics = [], scalar_prefetch = 0 : i64, scratch_operands = 0 : i64, tpu.core_type = #tpu.core_type<tc>} {
    %c0 = arith.constant 0 : index
    %c0_0 = arith.constant 0 : index
    %0 = vector.load %arg0[%c0, %c0_0] : memref<96x96xf32, #tpu.memory_space<vmem>>, vector<96x96xf32>
    %c0_1 = arith.constant 0 : index
    %c0_2 = arith.constant 0 : index
    %1 = vector.load %arg1[%c0_1, %c0_2] : memref<96x48xf32, #tpu.memory_space<vmem>>, vector<96x48xf32>
    %cst = arith.constant dense<0.000000e+00> : vector<96x48xf32>
    %2 = tpu.matmul %0, %1, %cst {dimension_numbers = #tpu.dot_dimension_numbers<[1], [0], [0], [1], [0, 0, 1, 1], [], []>} : vector<96x96xf32>, vector<96x48xf32>, vector<96x48xf32> -> vector<96x48xf32>
    %c0_3 = arith.constant 0 : index
    %c0_4 = arith.constant 0 : index
    %3 = vector.load %arg2[%c0_3, %c0_4] : memref<96x48xf32, #tpu.memory_space<vmem>>, vector<96x48xf32>
    tpu.vector_store %arg2[%c0_3, %c0_4], %2 {strides = array<i32>} : memref<96x48xf32, #tpu.memory_space<vmem>>, vector<96x48xf32>,
    return
  }
}

</mosaic_0001>

<llo_original>
// kernel: tpu_custom_call.1
$region0: #{tpu_custom_call.1}
  #allocation0 [shape = 'u32[]', space=smem, size = 0x4, offset = 0x4, fixed_abs, tag = 'smem constant byte address 0x4 - core index']
  #allocation1 [shape = 'u32[144,128]{1,0:T(1,128)}', space=vmem, size = 0x12000, scoped, tag = 'internal scratch']
  %s0 = inlined_call_operand.vmem [shape: f32[96,96], index: 0, kind: input, shape index: {}]
  %s1 = inlined_call_operand.vmem [shape: f32[96,48], index: 1, kind: input, shape index: {}]
  %s2 = inlined_call_operand.vmem [shape: f32[96,48], index: 2, kind: output, shape index: {}]
  %s3 = sld [smem:[#allocation0]]
  $region18: #{tpu_custom_call.1} parent=0
    _
  %s5 = ssub.s32 1, %s3
  %s6 = scalar_select 0, %s5, %s3
  // Predicated region
  $region2: #{tpu_custom_call.1} parent=0 // pred_check
    _
  $region3: #{tpu_custom_call.1} parent=0 // pred_check_branch
    %8 = sbr.rel (0) target = $region5
  $region4: #{tpu_custom_call.1} parent=0 // pred_region
    _
  $region5: #{tpu_custom_call.1} parent=0 // pred_fallthru
    _
  // Predicated region
  $region6: #{tpu_custom_call.1} parent=0 // pred_check
    _
  $region7: #{tpu_custom_call.1} parent=0 // pred_check_branch
    %10 = sbr.rel (0) target = $region9
  $region8: #{tpu_custom_call.1} parent=0 // pred_region
    _
  $region9: #{tpu_custom_call.1} parent=0 // pred_fallthru
    _
  %v11 = vld [vmem:[%s0] sm:$0xff]
  %v12 = vld [vmem:[%s0 + $0x8] sm:$0xff]
  %v13 = vld [vmem:[%s0 + $0x10] sm:$0xff]
  %v14 = vld [vmem:[%s0 + $0x18] sm:$0xff]
  %v15 = vld [vmem:[%s0 + $0x20] sm:$0xff]
  %v16 = vld [vmem:[%s0 + $0x28] sm:$0xff]
  %v17 = vld [vmem:[%s0 + $0x30] sm:$0xff]
  %v18 = vld [vmem:[%s0 + $0x38] sm:$0xff]
  %v19 = vld [vmem:[%s0 + $0x40] sm:$0xff]
  %v20 = vld [vmem:[%s0 + $0x48] sm:$0xff]
  %v21 = vld [vmem:[%s0 + $0x50] sm:$0xff]
  %v22 = vld [vmem:[%s0 + $0x58] sm:$0xff]
  %v23 = vld [vmem:[%s1] sm:$0xff]
  %v24 = vld [vmem:[%s1 + $0x8] sm:$0xff]
  %v25 = vld [vmem:[%s1 + $0x10] sm:$0xff]
  %v26 = vld [vmem:[%s1 + $0x18] sm:$0xff]
  %v27 = vld [vmem:[%s1 + $0x20] sm:$0xff]
  %v28 = vld [vmem:[%s1 + $0x28] sm:$0xff]
  %v29 = vld [vmem:[%s1 + $0x30] sm:$0xff]
  %v30 = vld [vmem:[%s1 + $0x38] sm:$0xff]
  %v31 = vld [vmem:[%s1 + $0x40] sm:$0xff]
  %v32 = vld [vmem:[%s1 + $0x48] sm:$0xff]
  %v33 = vld [vmem:[%s1 + $0x50] sm:$0xff]
  %v34 = vld [vmem:[%s1 + $0x58] sm:$0xff]
  %vm35 = vcmask 785408
  %v37 = vsel %vm35, %v11, 0
  %v40 = vsel %vm35, %v12, 0
  %v43 = vsel %vm35, %v13, 0
  %v46 = vsel %vm35, %v14, 0
  %v49 = vsel %vm35, %v15, 0
  %v52 = vsel %vm35, %v16, 0
  %v55 = vsel %vm35, %v17, 0
  %v58 = vsel %vm35, %v18, 0
  %v61 = vsel %vm35, %v19, 0
  %v64 = vsel %vm35, %v20, 0
  %v67 = vsel %vm35, %v21, 0
  %v70 = vsel %vm35, %v22, 0
  %72 = vmatprep.subr.mxu0 0.0
  %73 = vmatpush1.msra.mxu0 %v23
  %74 = vmatprep.subr.mxu0 0.0
  %75 = vmatpush1.msra.mxu0 %v24
  %76 = vmatprep.subr.mxu0 0.0
  %77 = vmatpush1.msra.mxu0 %v25
  %78 = vmatprep.subr.mxu0 0.0
  %79 = vmatpush1.msra.mxu0 %v26
  %80 = vmatprep.subr.mxu0 0.0
  %81 = vmatpush1.msra.mxu0 %v27
  %82 = vmatprep.subr.mxu0 0.0
  %83 = vmatpush1.msra.mxu0 %v28
  %84 = vmatprep.subr.mxu0 0.0
  %85 = vmatpush1.msra.mxu0 %v29
  %86 = vmatprep.subr.mxu0 0.0
  %87 = vmatpush1.msra.mxu0 %v30
  %88 = vmatprep.subr.mxu0 0.0
  %89 = vmatpush1.msra.mxu0 %v31
  %90 = vmatprep.subr.mxu0 0.0
  %91 = vmatpush1.msra.mxu0 %v32
  %92 = vmatprep.subr.mxu0 0.0
  %93 = vmatpush1.msra.mxu0 %v33
  %94 = vmatprep.subr.mxu0 0.0
  %95 = vmatpush1.msra.mxu0 %v34
  %96 = vmatprep.subr.mxu0 0.0
  %97 = vmatpush1.msra.mxu0 0.0
  %98 = vmatprep.subr.mxu0 0.0
  %99 = vmatpush1.msra.mxu0 0.0
  %100 = vmatprep.subr.mxu0 0.0
  %101 = vmatpush1.msra.mxu0 0.0
  %102 = vmatprep.subr.mxu0 0.0
  %103 = vmatpush1.msra.mxu0 0.0
  %104 = vmatprep.subr.mxu0 0.0
  %105 = vmatpush1.msra.mxu0 0.0
  %106 = vmatprep.subr.mxu0 0.0
  %107 = vmatpush1.msra.mxu0 0.0
  %108 = vmatprep.subr.mxu0 0.0
  %109 = vmatpush1.msra.mxu0 0.0
  %110 = vmatprep.subr.mxu0 0.0
  %111 = vmatpush1.msra.mxu0 0.0
  %112 = vmatprep.subr.mxu0 0.0
  %113 = vmatpush1.msra.mxu0 0.0
  %114 = vmatprep.subr.mxu0 0.0
  %115 = vmatpush1.msra.mxu0 0.0
  %116 = vmatprep.subr.mxu0 0.0
  %117 = vmatpush1.msra.mxu0 0.0
  %118 = vmatprep.subr.mxu0 0.0
  %119 = vmatpush1.msra.mxu0 0.0
  %120 = vmatprep.subr.mxu0 0.0
  %121 = vmatpush1.msra.mxu0 0.0
  %122 = vmatprep.subr.mxu0 0.0
  %123 = vmatpush1.msra.mxu0 0.0
  %124 = vmatprep.subr.mxu0 0.0
  %125 = vmatpush1.msra.mxu0 0.0
  %126 = vmatprep.subr.mxu0 0.0
  %127 = vmatpush1.msra.mxu0 0.0
  %128 = vmatprep.subr.mxu0 0.0
  %129 = vmatpush1.msra.mxu0 0.0
  %130 = vmatprep.subr.mxu0 0.0
  %131 = vmatpush1.msra.mxu0 0.0
  %132 = vmatprep.subr.mxu0 0.0
  %133 = vmatpush1.msra.mxu0 0.0
  %134 = vmatprep.subr.mxu0 0.0
  %135 = vmatpush1.msra.mxu0 0.0
  %136 = vmatprep.mubr.f32.mxu0 0.0
  %137 = vmatmul.mubr.f32.gmra.mrb[0].mxu0 %v37
  %v138 = vpop.f32.mrb[0].mxu0
  %v139 = vadd.f32 0.0, %v138
  %v140 = vpop.f32.mrb[0].mxu0
  %141 = vmatprep.mubr.f32.mxu0 0.0
  %142 = vmatmul.mubr.f32.gmra.mrb[0].mxu0 %v40
  %v143 = vpop.f32.mrb[0].mxu0
  %v144 = vadd.f32 0.0, %v143
  %v145 = vpop.f32.mrb[0].mxu0
  %146 = vmatprep.mubr.f32.mxu0 0.0
  %147 = vmatmul.mubr.f32.gmra.mrb[0].mxu0 %v43
  %v148 = vpop.f32.mrb[0].mxu0
  %v149 = vadd.f32 0.0, %v148
  %v150 = vpop.f32.mrb[0].mxu0
  %151 = vmatprep.mubr.f32.mxu0 0.0
  %152 = vmatmul.mubr.f32.gmra.mrb[0].mxu0 %v46
  %v153 = vpop.f32.mrb[0].mxu0
  %v154 = vadd.f32 0.0, %v153
  %v155 = vpop.f32.mrb[0].mxu0
  %156 = vmatprep.mubr.f32.mxu0 0.0
  %157 = vmatmul.mubr.f32.gmra.mrb[0].mxu0 %v49
  %v158 = vpop.f32.mrb[0].mxu0
  %v159 = vadd.f32 0.0, %v158
  %v160 = vpop.f32.mrb[0].mxu0
  %161 = vmatprep.mubr.f32.mxu0 0.0
  %162 = vmatmul.mubr.f32.gmra.mrb[0].mxu0 %v52
  %v163 = vpop.f32.mrb[0].mxu0
  %v164 = vadd.f32 0.0, %v163
  %v165 = vpop.f32.mrb[0].mxu0
  %166 = vmatprep.mubr.f32.mxu0 0.0
  %167 = vmatmul.mubr.f32.gmra.mrb[0].mxu0 %v55
  %v168 = vpop.f32.mrb[0].mxu0
  %v169 = vadd.f32 0.0, %v168
  %v170 = vpop.f32.mrb[0].mxu0
  %171 = vmatprep.mubr.f32.mxu0 0.0
  %172 = vmatmul.mubr.f32.gmra.mrb[0].mxu0 %v58
  %v173 = vpop.f32.mrb[0].mxu0
  %v174 = vadd.f32 0.0, %v173
  %v175 = vpop.f32.mrb[0].mxu0
  %176 = vmatprep.mubr.f32.mxu0 0.0
  %177 = vmatmul.mubr.f32.gmra.mrb[0].mxu0 %v61
  %v178 = vpop.f32.mrb[0].mxu0
  %v179 = vadd.f32 0.0, %v178
  %v180 = vpop.f32.mrb[0].mxu0
  %181 = vmatprep.mubr.f32.mxu0 0.0
  %182 = vmatmul.mubr.f32.gmra.mrb[0].mxu0 %v64
  %v183 = vpop.f32.mrb[0].mxu0
  %v184 = vadd.f32 0.0, %v183
  %v185 = vpop.f32.mrb[0].mxu0
  %186 = vmatprep.mubr.f32.mxu0 0.0
  %187 = vmatmul.mubr.f32.gmra.mrb[0].mxu0 %v67
  %v188 = vpop.f32.mrb[0].mxu0
  %v189 = vadd.f32 0.0, %v188
  %v190 = vpop.f32.mrb[0].mxu0
  %191 = vmatprep.mubr.f32.mxu0 0.0
  %192 = vmatmul.mubr.f32.gmra.mrb[0].mxu0 %v70
  %v193 = vpop.f32.mrb[0].mxu0
  %v194 = vadd.f32 0.0, %v193
  %v195 = vpop.f32.mrb[0].mxu0
  %196 = vdwg.mxu0
  %vm197 = vcmask 392192
  %198 = vst.msk [vmem:[%s2] sm:$0xff] %vm197, %v139
  %199 = vst.msk [vmem:[%s2 + $0x8] sm:$0xff] %vm197, %v144
  %200 = vst.msk [vmem:[%s2 + $0x10] sm:$0xff] %vm197, %v149
  %201 = vst.msk [vmem:[%s2 + $0x18] sm:$0xff] %vm197, %v154
  %202 = vst.msk [vmem:[%s2 + $0x20] sm:$0xff] %vm197, %v159
  %203 = vst.msk [vmem:[%s2 + $0x28] sm:$0xff] %vm197, %v164
  %204 = vst.msk [vmem:[%s2 + $0x30] sm:$0xff] %vm197, %v169
  %205 = vst.msk [vmem:[%s2 + $0x38] sm:$0xff] %vm197, %v174
  %206 = vst.msk [vmem:[%s2 + $0x40] sm:$0xff] %vm197, %v179
  %207 = vst.msk [vmem:[%s2 + $0x48] sm:$0xff] %vm197, %v184
  %208 = vst.msk [vmem:[%s2 + $0x50] sm:$0xff] %vm197, %v189
  %209 = vst.msk [vmem:[%s2 + $0x58] sm:$0xff] %vm197, %v194
  // Predicated region
  $region10: #{tpu_custom_call.1} parent=0 // pred_check
    _
  $region11: #{tpu_custom_call.1} parent=0 // pred_check_branch
    %211 = sbr.rel (0) target = $region13
  $region12: #{tpu_custom_call.1} parent=0 // pred_region
    _
  $region13: #{tpu_custom_call.1} parent=0 // pred_fallthru
    _
  // Predicated region
  $region14: #{tpu_custom_call.1} parent=0 // pred_check
    _
  $region15: #{tpu_custom_call.1} parent=0 // pred_check_branch
    %213 = sbr.rel (0) target = $region17
  $region16: #{tpu_custom_call.1} parent=0 // pred_region
    _
  $region17: #{tpu_custom_call.1} parent=0 // pred_fallthru
    _

</llo_original>
